<compile_context>
chip_gen: v5e
topology: v5e:2x2
jax: 0.10.0
libtpu: 0.0.40
codegen_flags: <defaults>
</compile_context>

<pallas_src>
import functools

import jax
import jax.numpy as jnp
from jax import lax
from jax.experimental import pallas as pl
from jax.experimental.pallas import tpu as pltpu

_MAX_TILE_M = 1024     # sublane-axis tile cap (divisible by 8)
_MAX_TILE_N = 1024     # lane-axis tile cap (divisible by 128)
_SPLIT_THRESHOLD = 256  # above this, force >=2 blocks so both v7x TCs get work


def default_postprocess_script(x):
    return x


def _round_up(x, m):
    return -(-x // m) * m


def _pick_tile(dim, max_tile, align):
    """Tile size along one axis.

    dim <= 256        : single full-dim block (legal via the full-dim clause).
    256 < dim <= max  : split into >=2 aligned blocks so both v7x TensorCores
                        get grid work (harmless on single-TC v5e/v6e).
    dim > max         : aligned max_tile; partial last tile handled by Pallas.
    """
    if dim <= _SPLIT_THRESHOLD:
        return dim
    if dim <= max_tile:
        return min(max_tile, _round_up(-(-dim // 2), align))
    return max_tile


# ----------------------------------------------------------------------------
# Pallas kernels
# ----------------------------------------------------------------------------
def _pairwise_dist_kernel(x1c_ref, x2ct_ref, x1n_ref, x2n_ref, out_ref, *,
                          square_dist, x1_eq_x2, sqrt_in_bf16, postprocess_fn):
    """One (TM, TN) output tile of the pairwise (squared) distance matrix.

    x1c_ref : (TM, D)  mean-centered x1 rows
    x2ct_ref: (D, TN)  mean-centered x2, pre-transposed (canonical MXU layout)
    x1n_ref : (TM, 1)  ||x1c_i||^2
    x2n_ref : (1, TN)  ||x2c_j||^2 (lane-dense row)
    """
    prod = lax.dot_general(
        x1c_ref[...], x2ct_ref[...],
        dimension_numbers=(((1,), (0,)), ((), ())),
        preferred_element_type=jnp.float32,
    )                                                           # (TM, TN) f32
    res = -2.0 * prod + x1n_ref[...] + x2n_ref[...]

    def _finish(r):
        # res.clamp_min_(0); optionally clamp_min_(1e-30).sqrt_(); postprocess.
        r = jnp.maximum(r, 0.0)
        if not square_dist:
            r = jnp.maximum(r, 1e-30)
            if sqrt_in_bf16:
                # lossless w.r.t. the bf16 store; doubles EUP throughput.
                r = r.astype(jnp.bfloat16)
            r = jnp.sqrt(r)
        # Fused postprocess epilogue (e.g. RBF exp) — avoids a second full
        # HBM read/write pass over the (N, M) matrix.
        r = postprocess_fn(r)
        out_ref[...] = r.astype(out_ref.dtype)

    if x1_eq_x2:
        tm, tn = out_ref.shape
        row0 = pl.program_id(0) * tm
        col0 = pl.program_id(1) * tn
        # zero-fill only on tiles that actually intersect the global diagonal
        on_diag = jnp.logical_and(row0 < col0 + tn, col0 < row0 + tm)

        @pl.when(on_diag)
        def _():
            # cheap diag mask: small (tm,1)/(1,tn) iotas + scalar offset,
            # no full (tm,tn) int32 iota materialization.
            ri = lax.broadcasted_iota(jnp.int32, (tm, 1), 0) + (row0 - col0)
            ci = lax.broadcasted_iota(jnp.int32, (1, tn), 1)
            _finish(jnp.where(ri == ci, 0.0, res))

        @pl.when(jnp.logical_not(on_diag))
        def _():
            _finish(res)
    else:
        _finish(res)


def _diag_dist_kernel(x1t_ref, x2t_ref, out_ref, *, square_dist, postprocess_fn):
    """Elementwise ||x1_i - x2_i|| for the diag=True, x1 != x2 path.

    Inputs are pre-transposed to (D, TN) so the reduction is over sublanes and
    the output (1, TN) is lane-dense (unmasked stores)."""
    d = x1t_ref[...].astype(jnp.float32) - x2t_ref[...].astype(jnp.float32)
    sq = jnp.sum(d * d, axis=0, keepdims=True)                  # (1, TN)
    res = sq if square_dist else jnp.sqrt(sq)
    res = postprocess_fn(res)
    out_ref[...] = res.astype(out_ref.dtype)


# ----------------------------------------------------------------------------
# pallas_call wrappers
# ----------------------------------------------------------------------------
def pairwise_dist(x1, x2, *, square_dist, x1_eq_x2,
                  postprocess_fn=default_postprocess_script):
    n, d = x1.shape
    m, _ = x2.shape

    # ---- hoisted global reductions (plain JAX, O((N+M)D)) -------------------
    x1f = x1.astype(jnp.float32)
    x2f = x2.astype(jnp.float32)
    adjustment = jnp.mean(x1f, axis=0, keepdims=True)            # global mean of x1
    x1c = x1f - adjustment
    x2c = x2f - adjustment
    x1_norm = jnp.sum(x1c * x1c, axis=-1, keepdims=True)         # (N, 1)
    x2_norm_row = jnp.sum(x2c * x2c, axis=-1)[None, :]           # (1, M) lane-dense
    x2ct = jnp.transpose(x2c)                                    # (D, M)

    # keep MXU operands in bf16 when inputs are bf16 (norms stay f32)
    is_bf16 = (x1.dtype == jnp.bfloat16)
    mm_dtype = jnp.bfloat16 if is_bf16 else jnp.float32
    x1c = x1c.astype(mm_dtype)
    x2ct = x2ct.astype(mm_dtype)

    tm = _pick_tile(n, _MAX_TILE_M, 8)
    tn = _pick_tile(m, _MAX_TILE_N, 128)
    grid = (pl.cdiv(n, tm), pl.cdiv(m, tn))

    out_itemsize = jnp.dtype(x1.dtype).itemsize
    cost = pl.CostEstimate(
        flops=int(2 * n * m * d),
        transcendentals=0 if square_dist else int(n * m),
        bytes_accessed=int((n * d + m * d) * jnp.dtype(mm_dtype).itemsize
                           + 4 * (n + m) + n * m * out_itemsize),
    )

    kern = functools.partial(
        _pairwise_dist_kernel, square_dist=square_dist, x1_eq_x2=x1_eq_x2,
        sqrt_in_bf16=is_bf16, postprocess_fn=postprocess_fn,
    )
    return pl.pallas_call(
        kern,
        out_shape=jax.ShapeDtypeStruct((n, m), x1.dtype),
        grid=grid,
        in_specs=[
            pl.BlockSpec((tm, d), lambda i, j: (i, 0)),
            pl.BlockSpec((d, tn), lambda i, j: (0, j)),
            pl.BlockSpec((tm, 1), lambda i, j: (i, 0)),
            pl.BlockSpec((1, tn), lambda i, j: (0, j)),
        ],
        out_specs=pl.BlockSpec((tm, tn), lambda i, j: (i, j)),
        compiler_params=pltpu.CompilerParams(
            dimension_semantics=("parallel", "parallel"),
            vmem_limit_bytes=32 * 1024 * 1024,   # safe on v5e/v6e/v7x (64 MiB phys)
        ),
        cost_estimate=cost,
    )(x1c, x2ct, x1_norm, x2_norm_row)


def diag_dist(x1, x2, *, square_dist, postprocess_fn=default_postprocess_script):
    n, d = x1.shape
    x1t = jnp.transpose(x1)                                      # (D, N)
    x2t = jnp.transpose(x2)
    tn = _pick_tile(n, _MAX_TILE_N, 128)
    grid = (pl.cdiv(n, tn),)
    kern = functools.partial(_diag_dist_kernel, square_dist=square_dist,
                             postprocess_fn=postprocess_fn)
    out = pl.pallas_call(
        kern,
        out_shape=jax.ShapeDtypeStruct((1, n), x1.dtype),        # lane-dense output
        grid=grid,
        in_specs=[
            pl.BlockSpec((d, tn), lambda i: (0, i)),
            pl.BlockSpec((d, tn), lambda i: (0, i)),
        ],
        out_specs=pl.BlockSpec((1, tn), lambda i: (0, i)),
        compiler_params=pltpu.CompilerParams(
            dimension_semantics=("parallel",),
        ),
    )(x1t, x2t)
    return out[0]


# ----------------------------------------------------------------------------
# JAX mirror of the PyTorch Kernel base class
# ----------------------------------------------------------------------------
class Kernel:
    """JAX/Pallas mirror of the pvi Kernel base class (hot path = covar_dist)."""

    def __init__(self, ard_num_dims=None, batch_shape=(), lengthscale=1.0,
                 outputscale=1.0, train_hypers=False):
        self.ard_num_dims = ard_num_dims
        self._batch_shape = tuple(batch_shape)
        self.train_hypers = train_hypers
        if len(self._batch_shape):
            outputscale_t = jnp.ones(self._batch_shape, jnp.float32) * outputscale
        else:
            outputscale_t = jnp.asarray(outputscale, jnp.float32)
        self.log_outputscale = jnp.log(outputscale_t)
        ls_dims = 1 if ard_num_dims is None else ard_num_dims
        self.log_lengthscale = jnp.log(
            jnp.ones((*self._batch_shape, 1, ls_dims), jnp.float32) * lengthscale
        )

    @property
    def lengthscale(self):
        return jnp.exp(self.log_lengthscale)

    @property
    def outputscale(self):
        return jnp.exp(self.log_outputscale)

    def covar_dist(self, x1, x2, diag=False, square_dist=False,
                   dist_postprocess_func=default_postprocess_script,
                   postprocess=True, x1_eq_x2=None):
        # x1: (N, D), x2: (M, D)  (unbatched 2-D hot path)
        # TODO(synk): torch.equal value-equality not reproduced (would force a
        # device->host sync); pass x1_eq_x2=True explicitly if needed.
        if x1_eq_x2 is None:
            x1_eq_x2 = x1 is x2
        post_fn = dist_postprocess_func if postprocess else default_postprocess_script
        if diag:
            if x1_eq_x2:
                res = jnp.zeros(x1.shape[-2], dtype=x1.dtype)
                return post_fn(res)
            return diag_dist(x1, x2, square_dist=square_dist,
                             postprocess_fn=post_fn)
        # Postprocess (e.g. RBF exp) is fused into the Pallas epilogue.
        return pairwise_dist(x1, x2, square_dist=square_dist, x1_eq_x2=x1_eq_x2,
                             postprocess_fn=post_fn)

    # forward() is abstract in the reference module; subclasses (e.g. RBF/Matern)
    # combine covar_dist with lengthscale/outputscale.
    # TODO(synk): abstract forward() has no concrete body to translate.


# ----------------------------------------------------------------------------
# Pure-JAX reference (mirrors torch semantics) for correctness checks
# ----------------------------------------------------------------------------
def _ref_sq_dist(x1, x2, x1_eq_x2):
    adjustment = jnp.mean(x1, axis=-2, keepdims=True)
    x1 = x1 - adjustment
    x2 = x2 - adjustment
    x1_norm = jnp.sum(x1 ** 2, axis=-1, keepdims=True)
    x2_norm = jnp.sum(x2 ** 2, axis=-1, keepdims=True)
    res = -2.0 * (x1 @ x2.T) + x1_norm + x2_norm.T
    if x1_eq_x2:
        n = res.shape[-1]
        res = res * (1.0 - jnp.eye(n, dtype=res.dtype))
    return jnp.maximum(res, 0.0)


def _ref_dist(x1, x2, x1_eq_x2):
    return jnp.sqrt(jnp.maximum(_ref_sq_dist(x1, x2, x1_eq_x2), 1e-30))


# ----------------------------------------------------------------------------
if __name__ == "__main__":
    key = jax.random.PRNGKey(0)
    k1, k2, k3 = jax.random.split(key, 3)

    kernel = Kernel(ard_num_dims=None, lengthscale=1.0, outputscale=1.0)

    # --- small shapes (single tile) ------------------------------------------
    N, M, D = 16, 16, 8
    x1 = jax.random.normal(k1, (N, D), jnp.float32)
    x2 = jax.random.normal(k2, (M, D), jnp.float32)

    out_sq = jax.block_until_ready(kernel.covar_dist(x1, x2, square_dist=True))
    out_d = jax.block_until_ready(kernel.covar_dist(x1, x2, square_dist=False))
    out_dd = jax.block_until_ready(kernel.covar_dist(x1, x1, square_dist=False))
    out_diag = jax.block_until_ready(kernel.covar_dist(x1, x2, diag=True))
    out_diag_sq = jax.block_until_ready(
        kernel.covar_dist(x1, x2, diag=True, square_dist=True))

    assert jnp.allclose(out_sq, _ref_sq_dist(x1, x2, False), atol=1e-4, rtol=1e-4)
    assert jnp.allclose(out_d, _ref_dist(x1, x2, False), atol=1e-4, rtol=1e-4)
    assert jnp.allclose(out_dd, _ref_dist(x1, x1, True), atol=1e-4, rtol=1e-4)
    assert jnp.allclose(out_diag, jnp.linalg.norm(x1 - x2, axis=-1),
                        atol=1e-4, rtol=1e-4)
    assert jnp.allclose(out_diag_sq, jnp.sum((x1 - x2) ** 2, axis=-1),
                        atol=1e-4, rtol=1e-4)

    # --- fused postprocess epilogue (RBF-style exp) ---------------------------
    def rbf_post(x):
        return jnp.exp(-x)

    out_rbf = jax.block_until_ready(
        kernel.covar_dist(x1, x2, square_dist=True,
                          dist_postprocess_func=rbf_post))
    assert jnp.allclose(out_rbf, jnp.exp(-_ref_sq_dist(x1, x2, False)),
                        atol=1e-4, rtol=1e-4)
    out_nopost = jax.block_until_ready(
        kernel.covar_dist(x1, x2, square_dist=True,
                          dist_postprocess_func=rbf_post, postprocess=False))
    assert jnp.allclose(out_nopost, _ref_sq_dist(x1, x2, False),
                        atol=1e-4, rtol=1e-4)

    # --- medium shapes (2x2 grid, partial tiles, diag gating, fused exp) ------
    Nb, Mb = 600, 600
    xb1 = jax.random.normal(k3, (Nb, D), jnp.float32)
    xb2 = jax.random.normal(k2, (Mb, D), jnp.float32)

    big_sq = jax.block_until_ready(kernel.covar_dist(xb1, xb2, square_dist=True))
    big_dd = jax.block_until_ready(kernel.covar_dist(xb1, xb1, square_dist=False))
    big_rbf = jax.block_until_ready(
        kernel.covar_dist(xb1, xb1, square_dist=True,
                          dist_postprocess_func=rbf_post, x1_eq_x2=True))
    big_diag = jax.block_until_ready(kernel.covar_dist(xb1, xb2, diag=True))

    assert jnp.allclose(big_sq, _ref_sq_dist(xb1, xb2, False), atol=1e-3, rtol=1e-4)
    assert jnp.allclose(big_dd, _ref_dist(xb1, xb1, True), atol=1e-3, rtol=1e-4)
    assert jnp.allclose(big_rbf, jnp.exp(-_ref_sq_dist(xb1, xb1, True)),
                        atol=1e-3, rtol=1e-3)
    assert jnp.allclose(big_diag, jnp.linalg.norm(xb1 - xb2, axis=-1),
                        atol=1e-3, rtol=1e-4)

    # --- asymmetric shapes (exercise max_tile cap + partial last tiles) -------
    Nc, Mc = 1100, 500
    xc1 = jax.random.normal(k1, (Nc, D), jnp.float32)
    xc2 = jax.random.normal(k3, (Mc, D), jnp.float32)
    asym = jax.block_until_ready(kernel.covar_dist(xc1, xc2, square_dist=False))
    assert jnp.allclose(asym, _ref_dist(xc1, xc2, False), atol=1e-3, rtol=1e-4)

    print("KERNEL_OK")
</pallas_src>

<mosaic_0001>
module attributes {stable_mosaic.version = 11 : i64} {
  func.func @_pairwise_dist_kernel(%arg0: i32, %arg1: i32, %arg2: memref<16x8xf32, #tpu.memory_space<vmem>>, %arg3: memref<8x16xf32, #tpu.memory_space<vmem>>, %arg4: memref<16x1xf32, #tpu.memory_space<vmem>>, %arg5: memref<1x16xf32, #tpu.memory_space<vmem>>, %arg6: memref<16x16xf32, #tpu.memory_space<vmem>>) attributes {dimension_semantics = [#tpu.dimension_semantics<parallel>, #tpu.dimension_semantics<parallel>], iteration_bounds = array<i64: 1, 1>, scalar_prefetch = 0 : i64, scratch_operands = 0 : i64, tpu.core_type = #tpu.core_type<tc>, window_params = [{transform_indices = @transform_0, window_bounds = array<i64: 16, 8>}, {transform_indices = @transform_1, window_bounds = array<i64: 8, 16>}, {transform_indices = @transform_2, window_bounds = array<i64: 16, 1>}, {transform_indices = @transform_3, window_bounds = array<i64: 1, 16>}, {transform_indices = @transform_4, window_bounds = array<i64: 16, 16>}]} {
    %c0 = arith.constant 0 : index
    %c0_0 = arith.constant 0 : index
    %0 = vector.load %arg2[%c0, %c0_0] : memref<16x8xf32, #tpu.memory_space<vmem>>, vector<16x8xf32>
    %c0_1 = arith.constant 0 : index
    %c0_2 = arith.constant 0 : index
    %1 = vector.load %arg3[%c0_1, %c0_2] : memref<8x16xf32, #tpu.memory_space<vmem>>, vector<8x16xf32>
    %cst = arith.constant dense<0.000000e+00> : vector<16x16xf32>
    %2 = tpu.matmul %0, %1, %cst {dimension_numbers = #tpu.dot_dimension_numbers<[1], [0], [0], [1], [0, 0, 1, 1], [], []>} : vector<16x8xf32>, vector<8x16xf32>, vector<16x16xf32> -> vector<16x16xf32>
    %cst_3 = arith.constant -2.000000e+00 : f32
    %3 = vector.broadcast %cst_3 : f32 to vector<16x16xf32>
    %4 = arith.mulf %3, %2 : vector<16x16xf32>
    %c0_4 = arith.constant 0 : index
    %c0_5 = arith.constant 0 : index
    %5 = vector.load %arg4[%c0_4, %c0_5] : memref<16x1xf32, #tpu.memory_space<vmem>>, vector<16x1xf32>
    %6 = vector.broadcast %5 : vector<16x1xf32> to vector<16x16xf32>
    %7 = arith.addf %4, %6 : vector<16x16xf32>
    %c0_6 = arith.constant 0 : index
    %c0_7 = arith.constant 0 : index
    %8 = vector.load %arg5[%c0_6, %c0_7] : memref<1x16xf32, #tpu.memory_space<vmem>>, vector<1x16xf32>
    %9 = vector.broadcast %8 : vector<1x16xf32> to vector<16x16xf32>
    %10 = arith.addf %7, %9 : vector<16x16xf32>
    %cst_8 = arith.constant 0.000000e+00 : f32
    %11 = vector.broadcast %cst_8 : f32 to vector<16x16xf32>
    %12 = arith.maximumf %10, %11 : vector<16x16xf32>
    %c0_9 = arith.constant 0 : index
    %c0_10 = arith.constant 0 : index
    %13 = vector.load %arg6[%c0_9, %c0_10] : memref<16x16xf32, #tpu.memory_space<vmem>>, vector<16x16xf32>
    tpu.vector_store %arg6[%c0_9, %c0_10], %12 {strides = array<i32>} : memref<16x16xf32, #tpu.memory_space<vmem>>, vector<16x16xf32>,
    return
  }
  func.func @transform_0(%arg0: i32, %arg1: i32) -> (i32, i32) {
    %c0_i32 = arith.constant 0 : i32
    %c0_i32_0 = arith.constant 0 : i32
    return %arg0, %c0_i32 : i32, i32
  }
  func.func @transform_1(%arg0: i32, %arg1: i32) -> (i32, i32) {
    %c0_i32 = arith.constant 0 : i32
    %c0_i32_0 = arith.constant 0 : i32
    return %c0_i32, %arg1 : i32, i32
  }
  func.func @transform_2(%arg0: i32, %arg1: i32) -> (i32, i32) {
    %c0_i32 = arith.constant 0 : i32
    %c0_i32_0 = arith.constant 0 : i32
    return %arg0, %c0_i32 : i32, i32
  }
  func.func @transform_3(%arg0: i32, %arg1: i32) -> (i32, i32) {
    %c0_i32 = arith.constant 0 : i32
    %c0_i32_0 = arith.constant 0 : i32
    return %c0_i32, %arg1 : i32, i32
  }
  func.func @transform_4(%arg0: i32, %arg1: i32) -> (i32, i32) {
    %c0_i32 = arith.constant 0 : i32
    return %arg0, %arg1 : i32, i32
  }
}

</mosaic_0001>

<llo_original>
// kernel: tpu_custom_call.1
$region0: #{tpu_custom_call.1}
  #allocation0 [shape = 'u32[]', space=smem, size = 0x4, offset = 0x4, fixed_abs, tag = 'smem constant byte address 0x4 - core index']
  #allocation1 [shape = 'u32[72,128]{1,0:T(1,128)}', space=vmem, size = 0x9000, scoped, tag = 'internal scratch']
  %s0 = inlined_call_operand.vmem [shape: f32[16,8], index: 0, kind: input, shape index: {}]
  %s1 = inlined_call_operand.vmem [shape: f32[8,16], index: 1, kind: input, shape index: {}]
  %s2 = inlined_call_operand.vmem [shape: f32[16,1], index: 2, kind: input, shape index: {}]
  %s3 = inlined_call_operand.vmem [shape: f32[1,16], index: 3, kind: input, shape index: {}]
  %s4 = inlined_call_operand.hbm [shape: f32[16,16], index: 4, kind: output, shape index: {}]
  %s5 = sld [smem:[#allocation0]]
  $region26: #{tpu_custom_call.1} parent=0
    _
  %s7 = ssub.s32 1, %s5
  %s8 = scalar_select 0, %s7, %s5
  $region1: #{tpu_custom_call.1} parent=0
    #allocation2 [shape = 'u8[8192]{0}', space=vmem, size = 0x2000, scoped, tag = 'output window, operand 0, single buffered']
    #allocation3 [shape = 's32[1]{0}', space=sflag, size = 0x4, scoped, tag = 'scoped memory for tpu_custom_call.1']
    %9 = vsyncpa [#allocation3], 0
    // Predicated region
    $region2: #{tpu_custom_call.1} parent=1 // pred_check
      _
    $region3: #{tpu_custom_call.1} parent=1 // pred_check_branch
      %11 = sbr.rel (0) target = $region5
    $region4: #{tpu_custom_call.1} parent=1 // pred_region
      _
    $region5: #{tpu_custom_call.1} parent=1 // pred_fallthru
      _
    // Predicated region
    $region6: #{tpu_custom_call.1} parent=1 // pred_check
      _
    $region7: #{tpu_custom_call.1} parent=1 // pred_check_branch
      %13 = sbr.rel (0) target = $region9
    $region8: #{tpu_custom_call.1} parent=1 // pred_region
      _
    $region9: #{tpu_custom_call.1} parent=1 // pred_fallthru
      _
    // Predicated region
    $region10: #{tpu_custom_call.1} parent=1 // pred_check
      _
    $region11: #{tpu_custom_call.1} parent=1 // pred_check_branch
      %15 = sbr.rel (0) target = $region13
    $region12: #{tpu_custom_call.1} parent=1 // pred_region
      _
    $region13: #{tpu_custom_call.1} parent=1 // pred_fallthru
      _
    // Predicated region
    $region14: #{tpu_custom_call.1} parent=1 // pred_check
      _
    $region15: #{tpu_custom_call.1} parent=1 // pred_check_branch
      %17 = sbr.rel (0) target = $region17
    $region16: #{tpu_custom_call.1} parent=1 // pred_region
      _
    $region17: #{tpu_custom_call.1} parent=1 // pred_fallthru
      _
    %v18 = vld [vmem:[%s0] sm:$0xff]
    %v19 = vld [vmem:[%s0 + $0x8] sm:$0xff]
    %v20 = vld [vmem:[%s1] sm:$0xff]
    %vm21 = vcmask 64512
    %v23 = vsel %vm21, %v18, 0
    %v26 = vsel %vm21, %v19, 0
    %28 = vmatpush.msra.mxu0 0.0
    %29 = vmatpush.msra.mxu0 0.0
    %30 = vmatpush.msra.mxu0 0.0
    %31 = vmatpush.msra.mxu0 0.0
    %32 = vmatpush.msra.mxu0 0.0
    %33 = vmatpush.msra.mxu0 0.0
    %34 = vmatpush.msra.mxu0 0.0
    %35 = vmatpush.msra.mxu0 0.0
    %36 = vmatpush.msra.mxu0 0.0
    %37 = vmatpush.msra.mxu0 0.0
    %38 = vmatpush.msra.mxu0 0.0
    %39 = vmatpush.msra.mxu0 0.0
    %40 = vmatpush.msra.mxu0 0.0
    %41 = vmatpush.msra.mxu0 0.0
    %42 = vmatpush.msra.mxu0 0.0
    %43 = vmatpush.msra.mxu0 %v20
    %44 = vmatmul.f32.gmra.mxu0 %v23
    %v45 = vpop.f32.mrf.mxu0
    %v46 = vadd.f32 0.0, %v45
    %47 = vmatmul.f32.gmra.mxu0 %v26
    %v48 = vpop.f32.mrf.mxu0
    %v49 = vadd.f32 0.0, %v48
    %50 = vdwg.mxu0
    %v51 = vmul.f32 %v46, -2.0
    %v52 = vmul.f32 %v49, -2.0
    %v53 = vld [vmem:[%s2] sm:$0xff]
    %v54 = vld [vmem:[%s2 + $0x8] sm:$0xff]
    %56 = vset.pattern.permute.xlu0 0
    %57 = vperm.xlu0 %56, %v53
    %v58 = vpop.permute.xlu0 %57
    %61 = vset.pattern.permute.xlu0 0
    %62 = vperm.xlu0 %61, %v54
    %v63 = vpop.permute.xlu0 %62
    %v65 = vadd.f32 %v51, %v58
    %v66 = vadd.f32 %v52, %v63
    %v67 = vld [vmem:[%s3] sm:$0x1]
    %v69 = vperm.slane %v67, 0
    %v71 = vadd.f32 %v65, %v69
    %v72 = vadd.f32 %v66, %v69
    %v73 = vmax.f32 %v71, 0.0
    %v74 = vmax.f32 %v72, 0.0
    %vm75 = vcmask 130048
    %76 = vst.msk [vmem:[#allocation2] sm:$0xff] %vm75, %v73
    %77 = vst.msk [vmem:[#allocation2 + $0x8] sm:$0xff] %vm75, %v74
    // Predicated region
    $region18: #{tpu_custom_call.1} parent=1 // pred_check
      _
    $region19: #{tpu_custom_call.1} parent=1 // pred_check_branch
      %79 = sbr.rel (0) target = $region21
    $region20: #{tpu_custom_call.1} parent=1 // pred_region
      %81 = vsyncadd [#allocation3], 0
      %s82 = sshll.u32 [#allocation2], 4
      %s83 = int_to_ptr.vmem [resolvable:$true] %s82
      %s84 = sshll.u32 %s4, 4
      %s85 = int_to_ptr.hbm [resolvable:$true] %s84
      %90 = dma.vmem_to_hbm [thread:$0]  %s83, 256, %s85, [#allocation3], 128, 128, 8
    $region21: #{tpu_custom_call.1} parent=1 // pred_fallthru
      _
    // Predicated region
    $region22: #{tpu_custom_call.1} parent=1 // pred_check
      _
    $region23: #{tpu_custom_call.1} parent=1 // pred_check_branch
      %92 = sbr.rel (0) target = $region25
    $region24: #{tpu_custom_call.1} parent=1 // pred_region
      %94 = dma.done [#allocation3], 256
    $region25: #{tpu_custom_call.1} parent=1 // pred_fallthru
      _
    %95 = vsyncpa [#allocation3], 1

</llo_original>
